<compile_context>
chip_gen: v5e
topology: v5e:2x2
jax: 0.10.0
libtpu: 0.0.40
codegen_flags: <defaults>
</compile_context>

<pallas_src>
import jax
import jax.numpy as jnp
from jax.experimental import pallas as pl
from jax.experimental.pallas import tpu as pltpu

D_IN, D_H1, D_H2, D_OUT = 110, 110, 50, 1

# 8192 rows * 110 * 4 B * 2 (double buffer) ~= 7.2 MiB of VMEM for the x tile:
# safe under the scoped-VMEM defaults of v5e (16 MiB), v6e (32 MiB), v7x (32 MiB).
_MAX_TILE = 8192


def _affine_sigmoid_kernel(x_ref, w_ref, b_ref, o_ref):
    # x_ref: (TB, D_IN) VMEM   -- batch tile, batch on sublanes, D on lanes
    # w_ref: (1, D_IN)  VMEM   -- collapsed weight row (resident across steps)
    # b_ref: (1, 1)     SMEM   -- collapsed scalar bias
    # o_ref: (1, TB)    VMEM   -- batch on lanes -> unmasked lane-dense stores
    #
    # Contract the last dims of both operands (q @ k^T pattern): the (TB, D)
    # tile is used in its natural layout, no transpose/relayout of the big tile.
    z = jax.lax.dot_general(
        w_ref[...], x_ref[...],
        dimension_numbers=(((1,), (1,)), ((), ())),
        preferred_element_type=jnp.float32,
    )                                                  # (1, TB) float32
    # sigmoid lowers to the EUP (logistic) path; MXU/VPU have plenty of slack.
    o_ref[...] = jax.nn.sigmoid(z + b_ref[0, 0]).astype(o_ref.dtype)


def _choose_tile(batch, block_b):
    """Batch tile: multiple of 128, VMEM-capped, single step for small B,
    and >= 2 grid steps when the batch is large (v7x megacore sharding)."""
    blk = max(128, (int(block_b) // 128) * 128)
    blk = min(blk, _MAX_TILE)
    if batch <= blk:
        # One grid step; block_shape == full array dims so the (8,128)
        # divisibility rule is waived and per-step overhead is minimal.
        return batch
    # Ensure at least 2 (roughly balanced) steps so ("parallel",) can shard the
    # batch across both TensorCores on v7x.
    half = (((batch + 1) // 2) + 127) // 128 * 128
    return min(blk, half)


def starting_network_forward(x, params, *, block_b=8192):
    """x: (B, 110). params: w1,b1,w2,b2,w3,b3 with W stored (in, out)."""
    B = x.shape[0]
    assert x.shape[1] == D_IN
    hi = jax.lax.Precision.HIGHEST  # keep the collapse in true f32

    # Algebraic collapse of the activation-free stack (once, outside the
    # kernel; tiny matmuls). Reassociates f32 sums; error ~1e-6.
    w_eff = jnp.dot(jnp.dot(params["w1"], params["w2"], precision=hi),
                    params["w3"], precision=hi)                          # (110, 1)
    b_eff = jnp.dot(jnp.dot(params["b1"], params["w2"], precision=hi) + params["b2"],
                    params["w3"], precision=hi) + params["b3"]           # (1, 1)
    w_row = w_eff.T.astype(x.dtype)                                      # (1, 110)
    b_eff = b_eff.astype(jnp.float32)

    tb = _choose_tile(B, block_b)
    grid = (pl.cdiv(B, tb),)

    itemsize = jnp.dtype(x.dtype).itemsize
    cost = pl.CostEstimate(
        flops=2 * B * D_IN,
        transcendentals=B,
        bytes_accessed=B * D_IN * itemsize + B * D_OUT * itemsize,
    )

    out_row = pl.pallas_call(
        _affine_sigmoid_kernel,
        out_shape=jax.ShapeDtypeStruct((1, B), x.dtype),
        grid=grid,
        in_specs=[
            pl.BlockSpec((tb, D_IN), lambda i: (i, 0)),              # x batch tile
            pl.BlockSpec((1, D_IN), lambda i: (0, 0)),               # weight row, resident
            pl.BlockSpec(memory_space=pltpu.MemorySpace.SMEM),       # scalar bias
        ],
        out_specs=pl.BlockSpec((1, tb), lambda i: (0, i)),           # batch on lanes
        compiler_params=pltpu.CompilerParams(
            dimension_semantics=("parallel",),                       # megacore on v7x
        ),
        cost_estimate=cost,
    )(x, w_row, b_eff)

    return out_row.reshape(B, D_OUT)


def init_params(key):
    """Deterministic init matching nn.Linear shapes: U(-1/sqrt(fan_in), +)."""
    ks = jax.random.split(key, 6)

    def linear(kw, kb, fan_in, fan_out):
        bound = 1.0 / jnp.sqrt(jnp.float32(fan_in))
        w = jax.random.uniform(kw, (fan_in, fan_out), jnp.float32, -bound, bound)
        b = jax.random.uniform(kb, (1, fan_out), jnp.float32, -bound, bound)
        return w, b

    w1, b1 = linear(ks[0], ks[1], D_IN, D_H1)
    w2, b2 = linear(ks[2], ks[3], D_H1, D_H2)
    w3, b3 = linear(ks[4], ks[5], D_H2, D_OUT)
    return {"w1": w1, "b1": b1, "w2": w2, "b2": b2, "w3": w3, "b3": b3}


def _reference(x, params):
    hi = jax.lax.Precision.HIGHEST
    h = jnp.dot(x, params["w1"], precision=hi) + params["b1"]
    h = jnp.dot(h, params["w2"], precision=hi) + params["b2"]
    h = jnp.dot(h, params["w3"], precision=hi) + params["b3"]
    return jax.nn.sigmoid(h)


if __name__ == "__main__":
    key = jax.random.PRNGKey(0)
    k_params, k_x = jax.random.split(key)
    params = init_params(k_params)

    # Case 1: small batch -> single grid step (overhead-minimizing path).
    B1 = 512
    x1 = jax.random.normal(k_x, (B1, D_IN), jnp.float32)
    out1 = jax.block_until_ready(starting_network_forward(x1, params))
    assert out1.shape == (B1, D_OUT)
    assert jnp.allclose(out1, _reference(x1, params), atol=1e-5, rtol=1e-5)

    # Case 2: non-divisible batch with a small tile -> multi-step pipelined
    # path and a ragged last tile (masked writeback of the padded rows).
    B2 = 1000
    x2 = jax.random.normal(jax.random.fold_in(k_x, 1), (B2, D_IN), jnp.float32)
    out2 = jax.block_until_ready(starting_network_forward(x2, params, block_b=256))
    assert out2.shape == (B2, D_OUT)
    assert jnp.allclose(out2, _reference(x2, params), atol=1e-5, rtol=1e-5)

    print("KERNEL_OK")
</pallas_src>

<mosaic_0001>
module attributes {stable_mosaic.version = 11 : i64} {
  func.func @_affine_sigmoid_kernel(%arg0: i32, %arg1: memref<512x110xf32, #tpu.memory_space<vmem>>, %arg2: memref<1x110xf32, #tpu.memory_space<vmem>>, %arg3: memref<1x1xf32, #tpu.memory_space<smem>>, %arg4: memref<1x512xf32, #tpu.memory_space<vmem>>) attributes {dimension_semantics = [#tpu.dimension_semantics<parallel>], iteration_bounds = array<i64: 1>, scalar_prefetch = 0 : i64, scratch_operands = 0 : i64, tpu.core_type = #tpu.core_type<tc>, window_params = [{transform_indices = @transform_0, window_bounds = array<i64: 512, 110>}, {pipeline_mode = #tpu.pipeline_mode<synchronous>, transform_indices = @transform_1, window_bounds = array<i64: 1, 110>}, {transform_indices = @transform_2, window_bounds = array<i64: 1, 1>}, {transform_indices = @transform_3, window_bounds = array<i64: 1, 512>}]} {
    %c0 = arith.constant 0 : index
    %c0_0 = arith.constant 0 : index
    %0 = vector.load %arg2[%c0, %c0_0] : memref<1x110xf32, #tpu.memory_space<vmem>>, vector<1x110xf32>
    %c0_1 = arith.constant 0 : index
    %c0_2 = arith.constant 0 : index
    %1 = vector.load %arg1[%c0_1, %c0_2] : memref<512x110xf32, #tpu.memory_space<vmem>>, vector<512x110xf32>
    %cst = arith.constant dense<0.000000e+00> : vector<1x512xf32>
    %2 = tpu.matmul %0, %1, %cst {dimension_numbers = #tpu.dot_dimension_numbers<[1], [1], [0], [0], [0, 0, 1, 0], [], []>} : vector<1x110xf32>, vector<512x110xf32>, vector<1x512xf32> -> vector<1x512xf32>
    %c0_3 = arith.constant 0 : index
    %c0_4 = arith.constant 0 : index
    %3 = memref.load %arg3[%c0_3, %c0_4] : memref<1x1xf32, #tpu.memory_space<smem>>
    %4 = vector.broadcast %3 : f32 to vector<1x512xf32>
    %5 = arith.addf %2, %4 : vector<1x512xf32>
    %6 = arith.negf %5 : vector<1x512xf32>
    %7 = math.exp %6 : vector<1x512xf32>
    %cst_5 = arith.constant 1.000000e+00 : f32
    %8 = vector.broadcast %cst_5 : f32 to vector<1x512xf32>
    %9 = arith.addf %8, %7 : vector<1x512xf32>
    %10 = arith.divf %8, %9 : vector<1x512xf32>
    %c0_6 = arith.constant 0 : index
    %c0_7 = arith.constant 0 : index
    %11 = vector.load %arg4[%c0_6, %c0_7] : memref<1x512xf32, #tpu.memory_space<vmem>>, vector<1x512xf32>
    tpu.vector_store %arg4[%c0_6, %c0_7], %10 {strides = array<i32>} : memref<1x512xf32, #tpu.memory_space<vmem>>, vector<1x512xf32>,
    return
  }
  func.func @transform_0(%arg0: i32) -> (i32, i32) {
    %c0_i32 = arith.constant 0 : i32
    %c0_i32_0 = arith.constant 0 : i32
    return %arg0, %c0_i32 : i32, i32
  }
  func.func @transform_1(%arg0: i32) -> (i32, i32) {
    %c0_i32 = arith.constant 0 : i32
    %c0_i32_0 = arith.constant 0 : i32
    %c0_i32_1 = arith.constant 0 : i32
    return %c0_i32, %c0_i32_0 : i32, i32
  }
  func.func @transform_2(%arg0: i32) -> (i32, i32) {
    %c0_i32 = arith.constant 0 : i32
    %c0_i32_0 = arith.constant 0 : i32
    %c0_i32_1 = arith.constant 0 : i32
    return %c0_i32, %c0_i32_0 : i32, i32
  }
  func.func @transform_3(%arg0: i32) -> (i32, i32) {
    %c0_i32 = arith.constant 0 : i32
    %c0_i32_0 = arith.constant 0 : i32
    return %c0_i32, %arg0 : i32, i32
  }
}

</mosaic_0001>

<llo_original>
// kernel: tpu_custom_call.1
$region0: #{tpu_custom_call.1}
  #allocation0 [shape = 'u32[]', space=smem, size = 0x4, offset = 0x4, fixed_abs, tag = 'smem constant byte address 0x4 - core index']
  #allocation1 [shape = 'u32[72,128]{1,0:T(1,128)}', space=vmem, size = 0x9000, scoped, tag = 'internal scratch']
  #allocation2 [shape = 'f32[1,1]{1,0:T(1,128)S(6)}', space=smem, size = 0x200, scoped, tag = 'scoped memory for tpu_custom_call.1']
  %s0 = inlined_call_operand.vmem [shape: f32[512,110], index: 0, kind: input, shape index: {}]
  %s1 = inlined_call_operand.vmem [shape: f32[1,110], index: 1, kind: input, shape index: {}]
  %s2 = inlined_call_operand.<no memory space> [shape: f32[1,1], index: 2, kind: input, shape index: {}]
  %s3 = inlined_call_operand.hbm [shape: f32[1,512], index: 3, kind: output, shape index: {}]
  %s4 = sld [smem:[#allocation0]]
  $region22: #{tpu_custom_call.1} parent=0
    _
  %s6 = ssub.s32 1, %s4
  %s7 = scalar_select 0, %s6, %s4
  %8 = sst [smem:[#allocation2]] %s2
  $region1: #{tpu_custom_call.1} parent=0
    #allocation3 [shape = 'u8[2048]{0}', space=vmem, size = 0x800, scoped, tag = 'output window, operand 0, single buffered']
    #allocation4 [shape = 's32[1]{0}', space=sflag, size = 0x4, scoped, tag = 'scoped memory for tpu_custom_call.1']
    %9 = vsyncpa [#allocation4], 0
    // Predicated region
    $region2: #{tpu_custom_call.1} parent=1 // pred_check
      _
    $region3: #{tpu_custom_call.1} parent=1 // pred_check_branch
      %11 = sbr.rel (0) target = $region5
    $region4: #{tpu_custom_call.1} parent=1 // pred_region
      _
    $region5: #{tpu_custom_call.1} parent=1 // pred_fallthru
      _
    // Predicated region
    $region6: #{tpu_custom_call.1} parent=1 // pred_check
      _
    $region7: #{tpu_custom_call.1} parent=1 // pred_check_branch
      %13 = sbr.rel (0) target = $region9
    $region8: #{tpu_custom_call.1} parent=1 // pred_region
      _
    $region9: #{tpu_custom_call.1} parent=1 // pred_fallthru
      _
    // Predicated region
    $region10: #{tpu_custom_call.1} parent=1 // pred_check
      _
    $region11: #{tpu_custom_call.1} parent=1 // pred_check_branch
      %15 = sbr.rel (0) target = $region13
    $region12: #{tpu_custom_call.1} parent=1 // pred_region
      _
    $region13: #{tpu_custom_call.1} parent=1 // pred_fallthru
      _
    %v16 = vld [vmem:[%s1] sm:$0x1]
    %v17 = vld [vmem:[%s0] sm:$0xff]
    %v18 = vld [vmem:[%s0 + $0x8] sm:$0xff]
    %v19 = vld [vmem:[%s0 + $0x10] sm:$0xff]
    %v20 = vld [vmem:[%s0 + $0x18] sm:$0xff]
    %v21 = vld [vmem:[%s0 + $0x20] sm:$0xff]
    %v22 = vld [vmem:[%s0 + $0x28] sm:$0xff]
    %v23 = vld [vmem:[%s0 + $0x30] sm:$0xff]
    %v24 = vld [vmem:[%s0 + $0x38] sm:$0xff]
    %v25 = vld [vmem:[%s0 + $0x40] sm:$0xff]
    %v26 = vld [vmem:[%s0 + $0x48] sm:$0xff]
    %v27 = vld [vmem:[%s0 + $0x50] sm:$0xff]
    %v28 = vld [vmem:[%s0 + $0x58] sm:$0xff]
    %v29 = vld [vmem:[%s0 + $0x60] sm:$0xff]
    %v30 = vld [vmem:[%s0 + $0x68] sm:$0xff]
    %v31 = vld [vmem:[%s0 + $0x70] sm:$0xff]
    %v32 = vld [vmem:[%s0 + $0x78] sm:$0xff]
    %v33 = vld [vmem:[%s0 + $0x80] sm:$0xff]
    %v34 = vld [vmem:[%s0 + $0x88] sm:$0xff]
    %v35 = vld [vmem:[%s0 + $0x90] sm:$0xff]
    %v36 = vld [vmem:[%s0 + $0x98] sm:$0xff]
    %v37 = vld [vmem:[%s0 + $0xa0] sm:$0xff]
    %v38 = vld [vmem:[%s0 + $0xa8] sm:$0xff]
    %v39 = vld [vmem:[%s0 + $0xb0] sm:$0xff]
    %v40 = vld [vmem:[%s0 + $0xb8] sm:$0xff]
    %v41 = vld [vmem:[%s0 + $0xc0] sm:$0xff]
    %v42 = vld [vmem:[%s0 + $0xc8] sm:$0xff]
    %v43 = vld [vmem:[%s0 + $0xd0] sm:$0xff]
    %v44 = vld [vmem:[%s0 + $0xd8] sm:$0xff]
    %v45 = vld [vmem:[%s0 + $0xe0] sm:$0xff]
    %v46 = vld [vmem:[%s0 + $0xe8] sm:$0xff]
    %v47 = vld [vmem:[%s0 + $0xf0] sm:$0xff]
    %v48 = vld [vmem:[%s0 + $0xf8] sm:$0xff]
    %v49 = vld [vmem:[%s0 + $0x100] sm:$0xff]
    %v50 = vld [vmem:[%s0 + $0x108] sm:$0xff]
    %v51 = vld [vmem:[%s0 + $0x110] sm:$0xff]
    %v52 = vld [vmem:[%s0 + $0x118] sm:$0xff]
    %v53 = vld [vmem:[%s0 + $0x120] sm:$0xff]
    %v54 = vld [vmem:[%s0 + $0x128] sm:$0xff]
    %v55 = vld [vmem:[%s0 + $0x130] sm:$0xff]
    %v56 = vld [vmem:[%s0 + $0x138] sm:$0xff]
    %v57 = vld [vmem:[%s0 + $0x140] sm:$0xff]
    %v58 = vld [vmem:[%s0 + $0x148] sm:$0xff]
    %v59 = vld [vmem:[%s0 + $0x150] sm:$0xff]
    %v60 = vld [vmem:[%s0 + $0x158] sm:$0xff]
    %v61 = vld [vmem:[%s0 + $0x160] sm:$0xff]
    %v62 = vld [vmem:[%s0 + $0x168] sm:$0xff]
    %v63 = vld [vmem:[%s0 + $0x170] sm:$0xff]
    %v64 = vld [vmem:[%s0 + $0x178] sm:$0xff]
    %v65 = vld [vmem:[%s0 + $0x180] sm:$0xff]
    %v66 = vld [vmem:[%s0 + $0x188] sm:$0xff]
    %v67 = vld [vmem:[%s0 + $0x190] sm:$0xff]
    %v68 = vld [vmem:[%s0 + $0x198] sm:$0xff]
    %v69 = vld [vmem:[%s0 + $0x1a0] sm:$0xff]
    %v70 = vld [vmem:[%s0 + $0x1a8] sm:$0xff]
    %v71 = vld [vmem:[%s0 + $0x1b0] sm:$0xff]
    %v72 = vld [vmem:[%s0 + $0x1b8] sm:$0xff]
    %v73 = vld [vmem:[%s0 + $0x1c0] sm:$0xff]
    %v74 = vld [vmem:[%s0 + $0x1c8] sm:$0xff]
    %v75 = vld [vmem:[%s0 + $0x1d0] sm:$0xff]
    %v76 = vld [vmem:[%s0 + $0x1d8] sm:$0xff]
    %v77 = vld [vmem:[%s0 + $0x1e0] sm:$0xff]
    %v78 = vld [vmem:[%s0 + $0x1e8] sm:$0xff]
    %v79 = vld [vmem:[%s0 + $0x1f0] sm:$0xff]
    %v80 = vld [vmem:[%s0 + $0x1f8] sm:$0xff]
    %s81 = sld [smem:[#allocation2]]
    %v82 = vstv %s81
    %vm83 = vcmask 900096
    %v85 = vsel %vm83, %v16, 0
    %v88 = vsel %vm83, %v17, 0
    %v91 = vsel %vm83, %v18, 0
    %v94 = vsel %vm83, %v19, 0
    %v97 = vsel %vm83, %v20, 0
    %v100 = vsel %vm83, %v21, 0
    %v103 = vsel %vm83, %v22, 0
    %v106 = vsel %vm83, %v23, 0
    %v109 = vsel %vm83, %v24, 0
    %v112 = vsel %vm83, %v25, 0
    %v115 = vsel %vm83, %v26, 0
    %v118 = vsel %vm83, %v27, 0
    %v121 = vsel %vm83, %v28, 0
    %v124 = vsel %vm83, %v29, 0
    %v127 = vsel %vm83, %v30, 0
    %v130 = vsel %vm83, %v31, 0
    %v133 = vsel %vm83, %v32, 0
    %v136 = vsel %vm83, %v33, 0
    %v139 = vsel %vm83, %v34, 0
    %v142 = vsel %vm83, %v35, 0
    %v145 = vsel %vm83, %v36, 0
    %v148 = vsel %vm83, %v37, 0
    %v151 = vsel %vm83, %v38, 0
    %v154 = vsel %vm83, %v39, 0
    %v157 = vsel %vm83, %v40, 0
    %v160 = vsel %vm83, %v41, 0
    %v163 = vsel %vm83, %v42, 0
    %v166 = vsel %vm83, %v43, 0
    %v169 = vsel %vm83, %v44, 0
    %v172 = vsel %vm83, %v45, 0
    %v175 = vsel %vm83, %v46, 0
    %v178 = vsel %vm83, %v47, 0
    %v181 = vsel %vm83, %v48, 0
    %v184 = vsel %vm83, %v49, 0
    %v187 = vsel %vm83, %v50, 0
    %v190 = vsel %vm83, %v51, 0
    %v193 = vsel %vm83, %v52, 0
    %v196 = vsel %vm83, %v53, 0
    %v199 = vsel %vm83, %v54, 0
    %v202 = vsel %vm83, %v55, 0
    %v205 = vsel %vm83, %v56, 0
    %v208 = vsel %vm83, %v57, 0
    %v211 = vsel %vm83, %v58, 0
    %v214 = vsel %vm83, %v59, 0
    %v217 = vsel %vm83, %v60, 0
    %v220 = vsel %vm83, %v61, 0
    %v223 = vsel %vm83, %v62, 0
    %v226 = vsel %vm83, %v63, 0
    %v229 = vsel %vm83, %v64, 0
    %v232 = vsel %vm83, %v65, 0
    %v235 = vsel %vm83, %v66, 0
    %v238 = vsel %vm83, %v67, 0
    %v241 = vsel %vm83, %v68, 0
    %v244 = vsel %vm83, %v69, 0
    %v247 = vsel %vm83, %v70, 0
    %v250 = vsel %vm83, %v71, 0
    %v253 = vsel %vm83, %v72, 0
    %v256 = vsel %vm83, %v73, 0
    %v259 = vsel %vm83, %v74, 0
    %v262 = vsel %vm83, %v75, 0
    %v265 = vsel %vm83, %v76, 0
    %v268 = vsel %vm83, %v77, 0
    %v271 = vsel %vm83, %v78, 0
    %v274 = vsel %vm83, %v79, 0
    %v277 = vsel %vm83, %v80, 0
    %279 = vmatpush.xpose.msra.mxu0 %v133
    %280 = vmatpush.xpose.msra.mxu0 %v130
    %281 = vmatpush.xpose.msra.mxu0 %v127
    %282 = vmatpush.xpose.msra.mxu0 %v124
    %283 = vmatpush.xpose.msra.mxu0 %v121
    %284 = vmatpush.xpose.msra.mxu0 %v118
    %285 = vmatpush.xpose.msra.mxu0 %v115
    %286 = vmatpush.xpose.msra.mxu0 %v112
    %287 = vmatpush.xpose.msra.mxu0 %v109
    %288 = vmatpush.xpose.msra.mxu0 %v106
    %289 = vmatpush.xpose.msra.mxu0 %v103
    %290 = vmatpush.xpose.msra.mxu0 %v100
    %291 = vmatpush.xpose.msra.mxu0 %v97
    %292 = vmatpush.xpose.msra.mxu0 %v94
    %293 = vmatpush.xpose.msra.mxu0 %v91
    %294 = vmatpush.xpose.msra.mxu0 %v88
    %295 = vmatmul.f32.gmra.mxu0 %v85
    %v296 = vpop.f32.mrf.mxu0
    %v297 = vadd.f32 %v82, %v296
    %298 = vdwg.mxu0
    %299 = vmatpush.xpose.msra.mxu0 %v181
    %300 = vmatpush.xpose.msra.mxu0 %v178
    %301 = vmatpush.xpose.msra.mxu0 %v175
    %302 = vmatpush.xpose.msra.mxu0 %v172
    %303 = vmatpush.xpose.msra.mxu0 %v169
    %304 = vmatpush.xpose.msra.mxu0 %v166
    %305 = vmatpush.xpose.msra.mxu0 %v163
    %306 = vmatpush.xpose.msra.mxu0 %v160
    %307 = vmatpush.xpose.msra.mxu0 %v157
    %308 = vmatpush.xpose.msra.mxu0 %v154
    %309 = vmatpush.xpose.msra.mxu0 %v151
    %310 = vmatpush.xpose.msra.mxu0 %v148
    %311 = vmatpush.xpose.msra.mxu0 %v145
    %312 = vmatpush.xpose.msra.mxu0 %v142
    %313 = vmatpush.xpose.msra.mxu0 %v139
    %314 = vmatpush.xpose.msra.mxu0 %v136
    %315 = vmatmul.f32.gmra.mxu0 %v85
    %v316 = vpop.f32.mrf.mxu0
    %v317 = vadd.f32 %v82, %v316
    %318 = vdwg.mxu0
    %319 = vmatpush.xpose.msra.mxu0 %v229
    %320 = vmatpush.xpose.msra.mxu0 %v226
    %321 = vmatpush.xpose.msra.mxu0 %v223
    %322 = vmatpush.xpose.msra.mxu0 %v220
    %323 = vmatpush.xpose.msra.mxu0 %v217
    %324 = vmatpush.xpose.msra.mxu0 %v214
    %325 = vmatpush.xpose.msra.mxu0 %v211
    %326 = vmatpush.xpose.msra.mxu0 %v208
    %327 = vmatpush.xpose.msra.mxu0 %v205
    %328 = vmatpush.xpose.msra.mxu0 %v202
    %329 = vmatpush.xpose.msra.mxu0 %v199
    %330 = vmatpush.xpose.msra.mxu0 %v196
    %331 = vmatpush.xpose.msra.mxu0 %v193
    %332 = vmatpush.xpose.msra.mxu0 %v190
    %333 = vmatpush.xpose.msra.mxu0 %v187
    %334 = vmatpush.xpose.msra.mxu0 %v184
    %335 = vmatmul.f32.gmra.mxu0 %v85
    %v336 = vpop.f32.mrf.mxu0
    %v337 = vadd.f32 %v82, %v336
    %338 = vdwg.mxu0
    %339 = vmatpush.xpose.msra.mxu0 %v277
    %340 = vmatpush.xpose.msra.mxu0 %v274
    %341 = vmatpush.xpose.msra.mxu0 %v271
    %342 = vmatpush.xpose.msra.mxu0 %v268
    %343 = vmatpush.xpose.msra.mxu0 %v265
    %344 = vmatpush.xpose.msra.mxu0 %v262
    %345 = vmatpush.xpose.msra.mxu0 %v259
    %346 = vmatpush.xpose.msra.mxu0 %v256
    %347 = vmatpush.xpose.msra.mxu0 %v253
    %348 = vmatpush.xpose.msra.mxu0 %v250
    %349 = vmatpush.xpose.msra.mxu0 %v247
    %350 = vmatpush.xpose.msra.mxu0 %v244
    %351 = vmatpush.xpose.msra.mxu0 %v241
    %352 = vmatpush.xpose.msra.mxu0 %v238
    %353 = vmatpush.xpose.msra.mxu0 %v235
    %354 = vmatpush.xpose.msra.mxu0 %v232
    %355 = vmatmul.f32.gmra.mxu0 %v85
    %v356 = vpop.f32.mrf.mxu0
    %v357 = vadd.f32 %v82, %v356
    %358 = vdwg.mxu0
    %v359 = vxor.u32 %v297, 2147483648
    %v360 = vxor.u32 %v317, 2147483648
    %v361 = vxor.u32 %v337, 2147483648
    %v362 = vxor.u32 %v357, 2147483648
    %v363 = vmul.f32 %v359, 1.442695
    %v364 = vpow.pop %v363
    %v365 = vmul.f32 %v360, 1.442695
    %v366 = vpow.pop %v365
    %v367 = vmul.f32 %v361, 1.442695
    %v368 = vpow.pop %v367
    %v369 = vmul.f32 %v362, 1.442695
    %v370 = vpow.pop %v369
    %v371 = vadd.f32 %v364, 1.0
    %v372 = vadd.f32 %v366, 1.0
    %v373 = vadd.f32 %v368, 1.0
    %v374 = vadd.f32 %v370, 1.0
    %v375 = vrcp.pop %v371
    %v376 = vmul.f32 %v371, %v375
    %v377 = vsub.f32 1.0, %v376
    %v378 = vmul.f32 %v375, %v377
    %v379 = vadd.f32 %v375, %v378
    %vm380 = vweird.f32 %v371
    %vm381 = vweird.f32 %v375
    %vm382 = vmor %vm380, %vm381
    %v383 = vsel %vm382, %v375, %v379
    %v384 = vand.u32 2147483647, %v371
    %vm385 = vcmp.eq.f32.partialorder %v384, 8.507059e+37
    %v386 = vand.u32 %v371, 2147483648
    %v387 = vor.u32 1.1754944e-38, %v386
    %v388 = vsel %vm385, %v387, %v383
    %v389 = vmul.f32 1.0, %v388
    %v390 = vrcp.pop %v372
    %v391 = vmul.f32 %v372, %v390
    %v392 = vsub.f32 1.0, %v391
    %v393 = vmul.f32 %v390, %v392
    %v394 = vadd.f32 %v390, %v393
    %vm395 = vweird.f32 %v372
    %vm396 = vweird.f32 %v390
    %vm397 = vmor %vm395, %vm396
    %v398 = vsel %vm397, %v390, %v394
    %v399 = vand.u32 2147483647, %v372
    %vm400 = vcmp.eq.f32.partialorder %v399, 8.507059e+37
    %v401 = vand.u32 %v372, 2147483648
    %v402 = vor.u32 1.1754944e-38, %v401
    %v403 = vsel %vm400, %v402, %v398
    %v404 = vmul.f32 1.0, %v403
    %v405 = vrcp.pop %v373
    %v406 = vmul.f32 %v373, %v405
    %v407 = vsub.f32 1.0, %v406
    %v408 = vmul.f32 %v405, %v407
    %v409 = vadd.f32 %v405, %v408
    %vm410 = vweird.f32 %v373
    %vm411 = vweird.f32 %v405
    %vm412 = vmor %vm410, %vm411
    %v413 = vsel %vm412, %v405, %v409
    %v414 = vand.u32 2147483647, %v373
    %vm415 = vcmp.eq.f32.partialorder %v414, 8.507059e+37
    %v416 = vand.u32 %v373, 2147483648
    %v417 = vor.u32 1.1754944e-38, %v416
    %v418 = vsel %vm415, %v417, %v413
    %v419 = vmul.f32 1.0, %v418
    %v420 = vrcp.pop %v374
    %v421 = vmul.f32 %v374, %v420
    %v422 = vsub.f32 1.0, %v421
    %v423 = vmul.f32 %v420, %v422
    %v424 = vadd.f32 %v420, %v423
    %vm425 = vweird.f32 %v374
    %vm426 = vweird.f32 %v420
    %vm427 = vmor %vm425, %vm426
    %v428 = vsel %vm427, %v420, %v424
    %v429 = vand.u32 2147483647, %v374
    %vm430 = vcmp.eq.f32.partialorder %v429, 8.507059e+37
    %v431 = vand.u32 %v374, 2147483648
    %v432 = vor.u32 1.1754944e-38, %v431
    %v433 = vsel %vm430, %v432, %v428
    %v434 = vmul.f32 1.0, %v433
    %v439 = vrot.slane %v404, 7
    %v440 = vrot.slane %v419, 6
    %v441 = vrot.slane %v434, 5
    %vm442 = vcmask 1040384
    %v443 = vsel %vm442, %v389, %v439
    %vm444 = vcmask 1042434
    %v445 = vsel %vm444, %v440, %v441
    %vm446 = vcmask 1041408
    %v447 = vsel %vm446, %v443, %v445
    %v449 = vlaneseq
    %vm450 = vcmp.ge.s32.totalorder %v449, 0
    %vm451 = vcmp.lt.s32.totalorder %v449, 512
    %vm452 = vmand %vm450, %vm451
    %453 = vst.msk [vmem:[#allocation3] sm:$0xf] %vm452, %v447
    // Predicated region
    $region14: #{tpu_custom_call.1} parent=1 // pred_check
      _
    $region15: #{tpu_custom_call.1} parent=1 // pred_check_branch
      %455 = sbr.rel (0) target = $region17
    $region16: #{tpu_custom_call.1} parent=1 // pred_region
      %457 = vsyncadd [#allocation4], 0
      %s459 = sshll.u32 [#allocation3], 4
      %s460 = int_to_ptr.vmem [resolvable:$true] %s459
      %s461 = sshll.u32 %s3, 4
      %s462 = int_to_ptr.hbm [resolvable:$true] %s461
      %464 = dma.vmem_to_hbm [thread:$0]  %s460, 64, %s462, [#allocation4]
    $region17: #{tpu_custom_call.1} parent=1 // pred_fallthru
      _
    // Predicated region
    $region18: #{tpu_custom_call.1} parent=1 // pred_check
      _
    $region19: #{tpu_custom_call.1} parent=1 // pred_check_branch
      %466 = sbr.rel (0) target = $region21
    $region20: #{tpu_custom_call.1} parent=1 // pred_region
      %468 = dma.done [#allocation4], 64
    $region21: #{tpu_custom_call.1} parent=1 // pred_fallthru
      _
    %469 = vsyncpa [#allocation4], 1

</llo_original>
